<compile_context>
chip_gen: v7x
topology: tpu7x:2x2x1
jax: 0.10.0
libtpu: 0.0.40
codegen_flags: <defaults>
</compile_context>

<pallas_src>
import jax
import jax.numpy as jnp
from jax.experimental import pallas as pl
from jax.experimental.pallas import tpu as pltpu


def _cdiv(a, b):
    return (a + b - 1) // b


def _round_up(x, m):
    return ((x + m - 1) // m) * m


def _sampling_matmul_kernel(p_ref, w_ref, o_ref):
    # p_ref: (tm, K_pad) patch tile; w_ref: (K_pad, nB_pad) sampling matrix
    # (constant index_map -> resident in VMEM); o_ref: (tm, nB_pad) f32.
    # One MXU matmul per grid step, f32 accumulation.
    o_ref[...] = jnp.dot(
        p_ref[...], w_ref[...], preferred_element_type=jnp.float32
    ).astype(o_ref.dtype)


def _choose_row_tile(M, K_pad, nB_pad, tm_req, in_itemsize,
                     vmem_budget=12 * 1024 * 1024):
    """Pick (row-tile size, grid steps).

    Largest tile that (a) respects the request, (b) keeps the double-buffered
    working set (patch + resident weight + output blocks) under `vmem_budget`
    so it fits every generation's scoped-VMEM default (16 MiB on v5e, 32 MiB
    on v6e/v7x), (c) keeps >=4 grid steps when M is large enough that tiles
    stay >=1024 rows (v7x two-TensorCore split), and (d) is balanced and a
    multiple of 16 (bf16 sublane-packing granularity).
    """
    per_row = K_pad * in_itemsize + nB_pad * 4        # patch row + out row
    weight_bytes = K_pad * nB_pad * in_itemsize       # resident weight block
    tm_vmem = max(16, (vmem_budget // 2 - weight_bytes) // per_row)
    tm_cap = max(16, min(tm_req, tm_vmem))
    num_tiles = max(_cdiv(M, tm_cap), min(4, _cdiv(M, 1024)))
    tm_eff = _round_up(_cdiv(M, num_tiles), 16)
    return tm_eff, num_tiles


def sampling_block(x, weight, B, *, tm=2048, compute_dtype=jnp.bfloat16):
    """Equivalent of SamplingBlock.forward.

    x:      (N, C, H, W)  float32, NCHW (H % B == 0, W % B == 0)
    weight: (nB, C, B, B) float32  (Conv2d weight, OIHW, bias=False)
    returns (N, nB, H//B, W//B) float32
    """
    N, C, H, W = x.shape
    nB = weight.shape[0]
    assert H % B == 0 and W % B == 0
    hb, wb = H // B, W // B
    K = C * B * B
    M = N * hb * wb

    # im2col for a non-overlapping BxB conv -> (M, K) rows in (c, kh, kw)
    # order.  XLA fuses this with the bf16 cast into ONE copy pass (read x
    # f32, write patches bf16).  See TODO above about fusing it into the
    # kernel to drop this pass entirely.
    patches = x.reshape(N, C, hb, B, wb, B)
    patches = patches.transpose(0, 2, 4, 1, 3, 5).reshape(M, K)
    w2d = weight.reshape(nB, K).T  # (K, nB)

    # --- TPU-friendly padded shapes (zero padding is exact) -----------------
    nB_pad = _round_up(nB, 128)     # lane-dense stores; do NOT pad to 256 -
                                    # kernel is HBM-bound, not MXU-bound.
    K_pad = _round_up(K, 128)       # clean MXU contraction dim
    in_itemsize = jnp.dtype(compute_dtype).itemsize
    tm_eff, num_tiles = _choose_row_tile(M, K_pad, nB_pad, tm, in_itemsize)
    M_pad = tm_eff * num_tiles

    if K_pad != K:
        patches = jnp.pad(patches, ((0, 0), (0, K_pad - K)))
        w2d = jnp.pad(w2d, ((0, K_pad - K), (0, 0)))
    if M_pad != M:
        patches = jnp.pad(patches, ((0, M_pad - M), (0, 0)))
    if nB_pad != nB:
        w2d = jnp.pad(w2d, ((0, 0), (0, nB_pad - nB)))

    # bf16 operands (half the patch DMA bytes, 2-3x MXU), f32 accumulation.
    patches = patches.astype(compute_dtype)
    w2d = w2d.astype(compute_dtype)

    cost = pl.CostEstimate(
        flops=2 * M_pad * K_pad * nB_pad,
        transcendentals=0,
        bytes_accessed=(M_pad * K_pad + K_pad * nB_pad) * in_itemsize
        + M_pad * nB_pad * 4,
    )

    out = pl.pallas_call(
        _sampling_matmul_kernel,
        out_shape=jax.ShapeDtypeStruct((M_pad, nB_pad), jnp.float32),
        grid_spec=pltpu.PrefetchScalarGridSpec(
            num_scalar_prefetch=0,
            grid=(num_tiles,),
            in_specs=[
                pl.BlockSpec((tm_eff, K_pad), lambda i: (i, 0)),   # patch tile
                pl.BlockSpec((K_pad, nB_pad), lambda i: (0, 0)),   # resident W
            ],
            out_specs=pl.BlockSpec((tm_eff, nB_pad), lambda i: (i, 0)),
        ),
        compiler_params=pltpu.CompilerParams(
            dimension_semantics=("parallel",),
        ),
        cost_estimate=cost,
    )(patches, w2d)

    # Drop padding and restore NCHW.  slice + reshape + transpose fuse into a
    # single output-sized copy pass in XLA; writing the tile transposed
    # in-kernel would not save HBM bytes since the nB_pad -> nB slice forces
    # this pass regardless.
    out = out[:M, :nB].astype(x.dtype)
    y = out.reshape(N, hb, wb, nB).transpose(0, 3, 1, 2)
    return y


if __name__ == "__main__":
    # Module defaults: B=32, l=1, r=0.1 -> nB = int(0.1 * 1 * 32**2) = 102
    B, l, r = 32, 1, 0.1
    nB = int(r * l * B ** 2)

    key = jax.random.PRNGKey(0)
    kx, kw, kx2 = jax.random.split(key, 3)

    # Deterministic Conv2d-style weight (OIHW), scaled by 1/sqrt(fan_in).
    fan_in = l * B * B
    weight = jax.random.normal(kw, (nB, l, B, B), dtype=jnp.float32) / jnp.sqrt(
        jnp.float32(fan_in)
    )

    def conv_ref(x):
        return jax.lax.conv_general_dilated(
            x, weight, window_strides=(B, B), padding="VALID",
            dimension_numbers=("NCHW", "OIHW", "NCHW"),
            precision=jax.lax.Precision.HIGHEST,
        )

    # Case 1: batch=2, 128x128 spatial (4x4 grid of 32x32 blocks) -> M = 32.
    x = jax.random.normal(kx, (2, l, 128, 128), dtype=jnp.float32)
    y = jax.block_until_ready(sampling_block(x, weight, B))
    y_ref = conv_ref(x)
    assert y.shape == (2, nB, 4, 4), y.shape
    # bf16 MXU operands with f32 accumulation -> loosened tolerance vs the
    # f32 conv reference.
    assert jnp.allclose(y, y_ref, atol=5e-2, rtol=5e-2), (
        "bf16 kernel mismatch vs reference conv, max abs err = "
        + str(float(jnp.max(jnp.abs(y - y_ref))))
    )

    # Case 2: batch=3, 64x64 -> M = 12 (not a multiple of 16): row padding.
    x2 = jax.random.normal(kx2, (3, l, 64, 64), dtype=jnp.float32)
    y2 = jax.block_until_ready(sampling_block(x2, weight, B))
    y2_ref = conv_ref(x2)
    assert y2.shape == (3, nB, 2, 2), y2.shape
    assert jnp.allclose(y2, y2_ref, atol=5e-2, rtol=5e-2), (
        "mismatch vs reference conv (case 2)"
    )

    # Case 3: small explicit tile -> multi-step grid (exercises pipelining).
    y3 = jax.block_until_ready(sampling_block(x, weight, B, tm=16))
    assert jnp.allclose(y3, y_ref, atol=5e-2, rtol=5e-2), (
        "mismatch vs reference conv (case 3, tm=16)"
    )

    # Case 4: f32 validation path (review correctness concern): padding is
    # exact, only accumulation order differs from the conv reference.
    y4 = jax.block_until_ready(
        sampling_block(x, weight, B, compute_dtype=jnp.float32)
    )
    assert jnp.allclose(y4, y_ref, atol=1e-3, rtol=1e-3), (
        "f32 kernel mismatch vs reference conv, max abs err = "
        + str(float(jnp.max(jnp.abs(y4 - y_ref))))
    )

    print("KERNEL_OK")
</pallas_src>

<mosaic_0001>
module attributes {stable_mosaic.version = 11 : i64} {
  func.func @_sampling_matmul_kernel(%arg0: i32, %arg1: memref<32x1024xbf16, #tpu.memory_space<vmem>>, %arg2: memref<1024x128xbf16, #tpu.memory_space<vmem>>, %arg3: memref<32x128xf32, #tpu.memory_space<vmem>>) attributes {dimension_semantics = [#tpu.dimension_semantics<parallel>], iteration_bounds = array<i64: 1>, scalar_prefetch = 0 : i64, scratch_operands = 0 : i64, tpu.core_type = #tpu.core_type<tc>, window_params = [{transform_indices = @transform_0, window_bounds = array<i64: 32, 1024>}, {pipeline_mode = #tpu.pipeline_mode<synchronous>, transform_indices = @transform_1, window_bounds = array<i64: 1024, 128>}, {transform_indices = @transform_2, window_bounds = array<i64: 32, 128>}]} {
    %c0 = arith.constant 0 : index
    %c0_0 = arith.constant 0 : index
    %0 = vector.load %arg1[%c0, %c0_0] : memref<32x1024xbf16, #tpu.memory_space<vmem>>, vector<32x1024xbf16>
    %c0_1 = arith.constant 0 : index
    %c0_2 = arith.constant 0 : index
    %1 = vector.load %arg2[%c0_1, %c0_2] : memref<1024x128xbf16, #tpu.memory_space<vmem>>, vector<1024x128xbf16>
    %cst = arith.constant dense<0.000000e+00> : vector<32x128xf32>
    %2 = tpu.matmul %0, %1, %cst {dimension_numbers = #tpu.dot_dimension_numbers<[1], [0], [0], [1], [0, 0, 1, 1], [], []>} : vector<32x1024xbf16>, vector<1024x128xbf16>, vector<32x128xf32> -> vector<32x128xf32>
    %c0_3 = arith.constant 0 : index
    %c0_4 = arith.constant 0 : index
    %3 = vector.load %arg3[%c0_3, %c0_4] : memref<32x128xf32, #tpu.memory_space<vmem>>, vector<32x128xf32>
    tpu.vector_store %arg3[%c0_3, %c0_4], %2 {strides = array<i32>} : memref<32x128xf32, #tpu.memory_space<vmem>>, vector<32x128xf32>,
    return
  }
  func.func @transform_0(%arg0: i32) -> (i32, i32) {
    %c0_i32 = arith.constant 0 : i32
    %c0_i32_0 = arith.constant 0 : i32
    return %arg0, %c0_i32 : i32, i32
  }
  func.func @transform_1(%arg0: i32) -> (i32, i32) {
    %c0_i32 = arith.constant 0 : i32
    %c0_i32_0 = arith.constant 0 : i32
    %c0_i32_1 = arith.constant 0 : i32
    return %c0_i32, %c0_i32_0 : i32, i32
  }
  func.func @transform_2(%arg0: i32) -> (i32, i32) {
    %c0_i32 = arith.constant 0 : i32
    %c0_i32_0 = arith.constant 0 : i32
    return %arg0, %c0_i32 : i32, i32
  }
}

</mosaic_0001>

<llo_original>
// kernel: tpu_custom_call.1
$region0: #{tpu_custom_call.1}
  #allocation0 [shape = 'u32[]', space=smem, size = 0x4, offset = 0x4, fixed_abs, tag = 'smem constant byte address 0x4 - core index']
  #allocation1 [shape = 'u32[144,128]{1,0:T(1,128)}', space=vmem, size = 0x12000, scoped, tag = 'internal scratch']
  %s0 = inlined_call_operand.hbm [shape: bf16[32,1024], index: 0, kind: input, shape index: {}]
  %s1 = inlined_call_operand.hbm [shape: bf16[1024,128], index: 1, kind: input, shape index: {}]
  %s2 = inlined_call_operand.hbm [shape: f32[32,128], index: 2, kind: output, shape index: {}]
  %s3 = sld [smem:[#allocation0]]
  $region26: #{tpu_custom_call.1} parent=0
    _
  %s5 = ssub.s32 1, %s3
  %s6 = scalar_select 0, %s5, %s3
  $region1: #{tpu_custom_call.1} parent=0
    #allocation2 [shape = 'u8[65536]{0}', space=vmem, size = 0x10000, scoped, tag = 'input window, operand 0, single buffered']
    #allocation3 [shape = 's32[1]{0}', space=sflag, size = 0x4, scoped, tag = 'scoped memory for tpu_custom_call.1']
    #allocation4 [shape = 's32[1]{0}', space=sflag, size = 0x4, scoped, tag = 'scoped memory for tpu_custom_call.1']
    #allocation5 [shape = 'u8[262144]{0}', space=vmem, size = 0x40000, scoped, tag = 'input window, operand 1, single buffered']
    #allocation6 [shape = 's32[1]{0}', space=sflag, size = 0x4, scoped, tag = 'scoped memory for tpu_custom_call.1']
    #allocation7 [shape = 'u8[16384]{0}', space=vmem, size = 0x4000, scoped, tag = 'output window, operand 0, single buffered']
    %7 = vsyncpa [#allocation3], 0
    %8 = vsyncpa [#allocation6], 0
    %9 = vsyncpa [#allocation4], 0
    // Predicated region
    $region2: #{tpu_custom_call.1} parent=1 // pred_check
      _
    $region3: #{tpu_custom_call.1} parent=1 // pred_check_branch
      %11 = sbr.rel (0) target = $region5
    $region4: #{tpu_custom_call.1} parent=1 // pred_region
      %s13 = ssub.s32 2048, 2048
      %14 = vsyncadd [#allocation3], %s13
      %s15 = sshll.u32 [#allocation2], 4
      %s16 = int_to_ptr.vmem [resolvable:$true] %s15
      %21 = dma.hbm_to_vmem [thread:$0]  %s0, 2048, %s16, [#allocation3], 512, 512, 32
    $region5: #{tpu_custom_call.1} parent=1 // pred_fallthru
      _
    // Predicated region
    $region6: #{tpu_custom_call.1} parent=1 // pred_check
      _
    $region7: #{tpu_custom_call.1} parent=1 // pred_check_branch
      %23 = sbr.rel (0) target = $region9
    $region8: #{tpu_custom_call.1} parent=1 // pred_region
      %s25 = ssub.s32 8192, 8192
      %26 = vsyncadd [#allocation6], %s25
      %s27 = sshll.u32 [#allocation5], 4
      %s28 = int_to_ptr.vmem [resolvable:$true] %s27
      %33 = dma.hbm_to_vmem [thread:$0]  %s1, 8192, %s28, [#allocation6], 64, 64, 4
    $region9: #{tpu_custom_call.1} parent=1 // pred_fallthru
      _
    // Predicated region
    $region10: #{tpu_custom_call.1} parent=1 // pred_check
      _
    $region11: #{tpu_custom_call.1} parent=1 // pred_check_branch
      %35 = sbr.rel (0) target = $region13
    $region12: #{tpu_custom_call.1} parent=1 // pred_region
      %36 = dma.done [#allocation3], 2048
    $region13: #{tpu_custom_call.1} parent=1 // pred_fallthru
      _
    // Predicated region
    $region14: #{tpu_custom_call.1} parent=1 // pred_check
      _
    $region15: #{tpu_custom_call.1} parent=1 // pred_check_branch
      %38 = sbr.rel (0) target = $region17
    $region16: #{tpu_custom_call.1} parent=1 // pred_region
      %39 = dma.done [#allocation6], 8192
    $region17: #{tpu_custom_call.1} parent=1 // pred_fallthru
      _
    %v41 = vld [vmem:[#allocation2] sm:$0xff]
    %v42 = vld [vmem:[#allocation2 + $0x8] sm:$0xff]
    %v43 = vld [vmem:[#allocation2 + $0x10] sm:$0xff]
    %v44 = vld [vmem:[#allocation2 + $0x18] sm:$0xff]
    %v45 = vld [vmem:[#allocation2 + $0x20] sm:$0xff]
    %v46 = vld [vmem:[#allocation2 + $0x28] sm:$0xff]
    %v47 = vld [vmem:[#allocation2 + $0x30] sm:$0xff]
    %v48 = vld [vmem:[#allocation2 + $0x38] sm:$0xff]
    %v49 = vld [vmem:[#allocation2 + $0x40] sm:$0xff]
    %v50 = vld [vmem:[#allocation2 + $0x48] sm:$0xff]
    %v51 = vld [vmem:[#allocation2 + $0x50] sm:$0xff]
    %v52 = vld [vmem:[#allocation2 + $0x58] sm:$0xff]
    %v53 = vld [vmem:[#allocation2 + $0x60] sm:$0xff]
    %v54 = vld [vmem:[#allocation2 + $0x68] sm:$0xff]
    %v55 = vld [vmem:[#allocation2 + $0x70] sm:$0xff]
    %v56 = vld [vmem:[#allocation2 + $0x78] sm:$0xff]
    %v57 = vld [vmem:[#allocation5] sm:$0xf]
    %v58 = vld [vmem:[#allocation5 + $0x4] sm:$0xf]
    %v59 = vld [vmem:[#allocation5 + $0x8] sm:$0xf]
    %v60 = vld [vmem:[#allocation5 + $0xc] sm:$0xf]
    %v61 = vld [vmem:[#allocation5 + $0x10] sm:$0xf]
    %v62 = vld [vmem:[#allocation5 + $0x14] sm:$0xf]
    %v63 = vld [vmem:[#allocation5 + $0x18] sm:$0xf]
    %v64 = vld [vmem:[#allocation5 + $0x1c] sm:$0xf]
    %v65 = vld [vmem:[#allocation5 + $0x20] sm:$0xf]
    %v66 = vld [vmem:[#allocation5 + $0x24] sm:$0xf]
    %v67 = vld [vmem:[#allocation5 + $0x28] sm:$0xf]
    %v68 = vld [vmem:[#allocation5 + $0x2c] sm:$0xf]
    %v69 = vld [vmem:[#allocation5 + $0x30] sm:$0xf]
    %v70 = vld [vmem:[#allocation5 + $0x34] sm:$0xf]
    %v71 = vld [vmem:[#allocation5 + $0x38] sm:$0xf]
    %v72 = vld [vmem:[#allocation5 + $0x3c] sm:$0xf]
    %v73 = vld [vmem:[#allocation5 + $0x40] sm:$0xf]
    %v74 = vld [vmem:[#allocation5 + $0x44] sm:$0xf]
    %v75 = vld [vmem:[#allocation5 + $0x48] sm:$0xf]
    %v76 = vld [vmem:[#allocation5 + $0x4c] sm:$0xf]
    %v77 = vld [vmem:[#allocation5 + $0x50] sm:$0xf]
    %v78 = vld [vmem:[#allocation5 + $0x54] sm:$0xf]
    %v79 = vld [vmem:[#allocation5 + $0x58] sm:$0xf]
    %v80 = vld [vmem:[#allocation5 + $0x5c] sm:$0xf]
    %v81 = vld [vmem:[#allocation5 + $0x60] sm:$0xf]
    %v82 = vld [vmem:[#allocation5 + $0x64] sm:$0xf]
    %v83 = vld [vmem:[#allocation5 + $0x68] sm:$0xf]
    %v84 = vld [vmem:[#allocation5 + $0x6c] sm:$0xf]
    %v85 = vld [vmem:[#allocation5 + $0x70] sm:$0xf]
    %v86 = vld [vmem:[#allocation5 + $0x74] sm:$0xf]
    %v87 = vld [vmem:[#allocation5 + $0x78] sm:$0xf]
    %v88 = vld [vmem:[#allocation5 + $0x7c] sm:$0xf]
    %v89 = vld [vmem:[#allocation5 + $0x80] sm:$0xf]
    %v90 = vld [vmem:[#allocation5 + $0x84] sm:$0xf]
    %v91 = vld [vmem:[#allocation5 + $0x88] sm:$0xf]
    %v92 = vld [vmem:[#allocation5 + $0x8c] sm:$0xf]
    %v93 = vld [vmem:[#allocation5 + $0x90] sm:$0xf]
    %v94 = vld [vmem:[#allocation5 + $0x94] sm:$0xf]
    %v95 = vld [vmem:[#allocation5 + $0x98] sm:$0xf]
    %v96 = vld [vmem:[#allocation5 + $0x9c] sm:$0xf]
    %v97 = vld [vmem:[#allocation5 + $0xa0] sm:$0xf]
    %v98 = vld [vmem:[#allocation5 + $0xa4] sm:$0xf]
    %v99 = vld [vmem:[#allocation5 + $0xa8] sm:$0xf]
    %v100 = vld [vmem:[#allocation5 + $0xac] sm:$0xf]
    %v101 = vld [vmem:[#allocation5 + $0xb0] sm:$0xf]
    %v102 = vld [vmem:[#allocation5 + $0xb4] sm:$0xf]
    %v103 = vld [vmem:[#allocation5 + $0xb8] sm:$0xf]
    %v104 = vld [vmem:[#allocation5 + $0xbc] sm:$0xf]
    %v105 = vld [vmem:[#allocation5 + $0xc0] sm:$0xf]
    %v106 = vld [vmem:[#allocation5 + $0xc4] sm:$0xf]
    %v107 = vld [vmem:[#allocation5 + $0xc8] sm:$0xf]
    %v108 = vld [vmem:[#allocation5 + $0xcc] sm:$0xf]
    %v109 = vld [vmem:[#allocation5 + $0xd0] sm:$0xf]
    %v110 = vld [vmem:[#allocation5 + $0xd4] sm:$0xf]
    %v111 = vld [vmem:[#allocation5 + $0xd8] sm:$0xf]
    %v112 = vld [vmem:[#allocation5 + $0xdc] sm:$0xf]
    %v113 = vld [vmem:[#allocation5 + $0xe0] sm:$0xf]
    %v114 = vld [vmem:[#allocation5 + $0xe4] sm:$0xf]
    %v115 = vld [vmem:[#allocation5 + $0xe8] sm:$0xf]
    %v116 = vld [vmem:[#allocation5 + $0xec] sm:$0xf]
    %v117 = vld [vmem:[#allocation5 + $0xf0] sm:$0xf]
    %v118 = vld [vmem:[#allocation5 + $0xf4] sm:$0xf]
    %v119 = vld [vmem:[#allocation5 + $0xf8] sm:$0xf]
    %v120 = vld [vmem:[#allocation5 + $0xfc] sm:$0xf]
    %v121 = vld [vmem:[#allocation5 + $0x100] sm:$0xf]
    %v122 = vld [vmem:[#allocation5 + $0x104] sm:$0xf]
    %v123 = vld [vmem:[#allocation5 + $0x108] sm:$0xf]
    %v124 = vld [vmem:[#allocation5 + $0x10c] sm:$0xf]
    %v125 = vld [vmem:[#allocation5 + $0x110] sm:$0xf]
    %v126 = vld [vmem:[#allocation5 + $0x114] sm:$0xf]
    %v127 = vld [vmem:[#allocation5 + $0x118] sm:$0xf]
    %v128 = vld [vmem:[#allocation5 + $0x11c] sm:$0xf]
    %v129 = vld [vmem:[#allocation5 + $0x120] sm:$0xf]
    %v130 = vld [vmem:[#allocation5 + $0x124] sm:$0xf]
    %v131 = vld [vmem:[#allocation5 + $0x128] sm:$0xf]
    %v132 = vld [vmem:[#allocation5 + $0x12c] sm:$0xf]
    %v133 = vld [vmem:[#allocation5 + $0x130] sm:$0xf]
    %v134 = vld [vmem:[#allocation5 + $0x134] sm:$0xf]
    %v135 = vld [vmem:[#allocation5 + $0x138] sm:$0xf]
    %v136 = vld [vmem:[#allocation5 + $0x13c] sm:$0xf]
    %v137 = vld [vmem:[#allocation5 + $0x140] sm:$0xf]
    %v138 = vld [vmem:[#allocation5 + $0x144] sm:$0xf]
    %v139 = vld [vmem:[#allocation5 + $0x148] sm:$0xf]
    %v140 = vld [vmem:[#allocation5 + $0x14c] sm:$0xf]
    %v141 = vld [vmem:[#allocation5 + $0x150] sm:$0xf]
    %v142 = vld [vmem:[#allocation5 + $0x154] sm:$0xf]
    %v143 = vld [vmem:[#allocation5 + $0x158] sm:$0xf]
    %v144 = vld [vmem:[#allocation5 + $0x15c] sm:$0xf]
    %v145 = vld [vmem:[#allocation5 + $0x160] sm:$0xf]
    %v146 = vld [vmem:[#allocation5 + $0x164] sm:$0xf]
    %v147 = vld [vmem:[#allocation5 + $0x168] sm:$0xf]
    %v148 = vld [vmem:[#allocation5 + $0x16c] sm:$0xf]
    %v149 = vld [vmem:[#allocation5 + $0x170] sm:$0xf]
    %v150 = vld [vmem:[#allocation5 + $0x174] sm:$0xf]
    %v151 = vld [vmem:[#allocation5 + $0x178] sm:$0xf]
    %v152 = vld [vmem:[#allocation5 + $0x17c] sm:$0xf]
    %v153 = vld [vmem:[#allocation5 + $0x180] sm:$0xf]
    %v154 = vld [vmem:[#allocation5 + $0x184] sm:$0xf]
    %v155 = vld [vmem:[#allocation5 + $0x188] sm:$0xf]
    %v156 = vld [vmem:[#allocation5 + $0x18c] sm:$0xf]
    %v157 = vld [vmem:[#allocation5 + $0x190] sm:$0xf]
    %v158 = vld [vmem:[#allocation5 + $0x194] sm:$0xf]
    %v159 = vld [vmem:[#allocation5 + $0x198] sm:$0xf]
    %v160 = vld [vmem:[#allocation5 + $0x19c] sm:$0xf]
    %v161 = vld [vmem:[#allocation5 + $0x1a0] sm:$0xf]
    %v162 = vld [vmem:[#allocation5 + $0x1a4] sm:$0xf]
    %v163 = vld [vmem:[#allocation5 + $0x1a8] sm:$0xf]
    %v164 = vld [vmem:[#allocation5 + $0x1ac] sm:$0xf]
    %v165 = vld [vmem:[#allocation5 + $0x1b0] sm:$0xf]
    %v166 = vld [vmem:[#allocation5 + $0x1b4] sm:$0xf]
    %v167 = vld [vmem:[#allocation5 + $0x1b8] sm:$0xf]
    %v168 = vld [vmem:[#allocation5 + $0x1bc] sm:$0xf]
    %v169 = vld [vmem:[#allocation5 + $0x1c0] sm:$0xf]
    %v170 = vld [vmem:[#allocation5 + $0x1c4] sm:$0xf]
    %v171 = vld [vmem:[#allocation5 + $0x1c8] sm:$0xf]
    %v172 = vld [vmem:[#allocation5 + $0x1cc] sm:$0xf]
    %v173 = vld [vmem:[#allocation5 + $0x1d0] sm:$0xf]
    %v174 = vld [vmem:[#allocation5 + $0x1d4] sm:$0xf]
    %v175 = vld [vmem:[#allocation5 + $0x1d8] sm:$0xf]
    %v176 = vld [vmem:[#allocation5 + $0x1dc] sm:$0xf]
    %v177 = vld [vmem:[#allocation5 + $0x1e0] sm:$0xf]
    %v178 = vld [vmem:[#allocation5 + $0x1e4] sm:$0xf]
    %v179 = vld [vmem:[#allocation5 + $0x1e8] sm:$0xf]
    %v180 = vld [vmem:[#allocation5 + $0x1ec] sm:$0xf]
    %v181 = vld [vmem:[#allocation5 + $0x1f0] sm:$0xf]
    %v182 = vld [vmem:[#allocation5 + $0x1f4] sm:$0xf]
    %v183 = vld [vmem:[#allocation5 + $0x1f8] sm:$0xf]
    %v184 = vld [vmem:[#allocation5 + $0x1fc] sm:$0xf]
    %v201 = vunpack.c.l.b16 %v41
    %v202 = vunpack.c.h.b16 %v41
    %v203 = vunpack.c.l.b16 %v42
    %v204 = vunpack.c.h.b16 %v42
    %v205 = vunpack.c.l.b16 %v43
    %v206 = vunpack.c.h.b16 %v43
    %v207 = vunpack.c.l.b16 %v44
    %v208 = vunpack.c.h.b16 %v44
    %v209 = vunpack.c.l.b16 %v45
    %v210 = vunpack.c.h.b16 %v45
    %v211 = vunpack.c.l.b16 %v46
    %v212 = vunpack.c.h.b16 %v46
    %v213 = vunpack.c.l.b16 %v47
    %v214 = vunpack.c.h.b16 %v47
    %v215 = vunpack.c.l.b16 %v48
    %v216 = vunpack.c.h.b16 %v48
    %v217 = vunpack.c.l.b16 %v49
    %v218 = vunpack.c.h.b16 %v49
    %v219 = vunpack.c.l.b16 %v50
    %v220 = vunpack.c.h.b16 %v50
    %v221 = vunpack.c.l.b16 %v51
    %v222 = vunpack.c.h.b16 %v51
    %v223 = vunpack.c.l.b16 %v52
    %v224 = vunpack.c.h.b16 %v52
    %v225 = vunpack.c.l.b16 %v53
    %v226 = vunpack.c.h.b16 %v53
    %v227 = vunpack.c.l.b16 %v54
    %v228 = vunpack.c.h.b16 %v54
    %v229 = vunpack.c.l.b16 %v55
    %v230 = vunpack.c.h.b16 %v55
    %v231 = vunpack.c.l.b16 %v56
    %v232 = vunpack.c.h.b16 %v56
    %v233 = vpack.c.b16 %v209, %v201
    %v234 = vpack.c.b16 %v210, %v202
    %v235 = vpack.c.b16 %v211, %v203
    %v236 = vpack.c.b16 %v212, %v204
    %v237 = vpack.c.b16 %v213, %v205
    %v238 = vpack.c.b16 %v214, %v206
    %v239 = vpack.c.b16 %v215, %v207
    %v240 = vpack.c.b16 %v216, %v208
    %v241 = vpack.c.b16 %v225, %v217
    %v242 = vpack.c.b16 %v226, %v218
    %v243 = vpack.c.b16 %v227, %v219
    %v244 = vpack.c.b16 %v228, %v220
    %v245 = vpack.c.b16 %v229, %v221
    %v246 = vpack.c.b16 %v230, %v222
    %v247 = vpack.c.b16 %v231, %v223
    %v248 = vpack.c.b16 %v232, %v224
    %v393 = vunpack.c.l.b16 %v57
    %v394 = vunpack.c.l.b16 %v58
    %v395 = vunpack.c.l.b16 %v59
    %v396 = vunpack.c.l.b16 %v60
    %v397 = vunpack.c.l.b16 %v61
    %v398 = vunpack.c.l.b16 %v62
    %v399 = vunpack.c.l.b16 %v63
    %v400 = vunpack.c.l.b16 %v64
    %v401 = vunpack.c.l.b16 %v65
    %v402 = vunpack.c.l.b16 %v66
    %v403 = vunpack.c.l.b16 %v67
    %v404 = vunpack.c.l.b16 %v68
    %v405 = vunpack.c.l.b16 %v69
    %v406 = vunpack.c.l.b16 %v70
    %v407 = vunpack.c.l.b16 %v71
    %v408 = vunpack.c.l.b16 %v72
    %v409 = vunpack.c.l.b16 %v73
    %v410 = vunpack.c.l.b16 %v74
    %v411 = vunpack.c.l.b16 %v75
    %v412 = vunpack.c.l.b16 %v76
    %v413 = vunpack.c.l.b16 %v77
    %v414 = vunpack.c.l.b16 %v78
    %v415 = vunpack.c.l.b16 %v79
    %v416 = vunpack.c.l.b16 %v80
    %v417 = vunpack.c.l.b16 %v81
    %v418 = vunpack.c.l.b16 %v82
    %v419 = vunpack.c.l.b16 %v83
    %v420 = vunpack.c.l.b16 %v84
    %v421 = vunpack.c.l.b16 %v85
    %v422 = vunpack.c.l.b16 %v86
    %v423 = vunpack.c.l.b16 %v87
    %v424 = vunpack.c.l.b16 %v88
    %v425 = vunpack.c.l.b16 %v89
    %v426 = vunpack.c.l.b16 %v90
    %v427 = vunpack.c.l.b16 %v91
    %v428 = vunpack.c.l.b16 %v92
    %v429 = vunpack.c.l.b16 %v93
    %v430 = vunpack.c.l.b16 %v94
    %v431 = vunpack.c.l.b16 %v95
    %v432 = vunpack.c.l.b16 %v96
    %v433 = vunpack.c.l.b16 %v97
    %v434 = vunpack.c.l.b16 %v98
    %v435 = vunpack.c.l.b16 %v99
    %v436 = vunpack.c.l.b16 %v100
    %v437 = vunpack.c.l.b16 %v101
    %v438 = vunpack.c.l.b16 %v102
    %v439 = vunpack.c.l.b16 %v103
    %v440 = vunpack.c.l.b16 %v104
    %v441 = vunpack.c.l.b16 %v105
    %v442 = vunpack.c.l.b16 %v106
    %v443 = vunpack.c.l.b16 %v107
    %v444 = vunpack.c.l.b16 %v108
    %v445 = vunpack.c.l.b16 %v109
    %v446 = vunpack.c.l.b16 %v110
    %v447 = vunpack.c.l.b16 %v111
    %v448 = vunpack.c.l.b16 %v112
    %v449 = vunpack.c.l.b16 %v113
    %v450 = vunpack.c.l.b16 %v114
    %v451 = vunpack.c.l.b16 %v115
    %v452 = vunpack.c.l.b16 %v116
    %v453 = vunpack.c.l.b16 %v117
    %v454 = vunpack.c.l.b16 %v118
    %v455 = vunpack.c.l.b16 %v119
    %v456 = vunpack.c.l.b16 %v120
    %v457 = vunpack.c.l.b16 %v121
    %v458 = vunpack.c.l.b16 %v122
    %v459 = vunpack.c.l.b16 %v123
    %v460 = vunpack.c.l.b16 %v124
    %v461 = vunpack.c.l.b16 %v125
    %v462 = vunpack.c.l.b16 %v126
    %v463 = vunpack.c.l.b16 %v127
    %v464 = vunpack.c.l.b16 %v128
    %v465 = vunpack.c.l.b16 %v129
    %v466 = vunpack.c.l.b16 %v130
    %v467 = vunpack.c.l.b16 %v131
    %v468 = vunpack.c.l.b16 %v132
    %v469 = vunpack.c.l.b16 %v133
    %v470 = vunpack.c.l.b16 %v134
    %v471 = vunpack.c.l.b16 %v135
    %v472 = vunpack.c.l.b16 %v136
    %v473 = vunpack.c.l.b16 %v137
    %v474 = vunpack.c.l.b16 %v138
    %v475 = vunpack.c.l.b16 %v139
    %v476 = vunpack.c.l.b16 %v140
    %v477 = vunpack.c.l.b16 %v141
    %v478 = vunpack.c.l.b16 %v142
    %v479 = vunpack.c.l.b16 %v143
    %v480 = vunpack.c.l.b16 %v144
    %v481 = vunpack.c.l.b16 %v145
    %v482 = vunpack.c.l.b16 %v146
    %v483 = vunpack.c.l.b16 %v147
    %v484 = vunpack.c.l.b16 %v148
    %v485 = vunpack.c.l.b16 %v149
    %v486 = vunpack.c.l.b16 %v150
    %v487 = vunpack.c.l.b16 %v151
    %v488 = vunpack.c.l.b16 %v152
    %v489 = vunpack.c.l.b16 %v153
    %v490 = vunpack.c.l.b16 %v154
    %v491 = vunpack.c.l.b16 %v155
    %v492 = vunpack.c.l.b16 %v156
    %v493 = vunpack.c.l.b16 %v157
    %v494 = vunpack.c.l.b16 %v158
    %v495 = vunpack.c.l.b16 %v159
    %v496 = vunpack.c.l.b16 %v160
    %v497 = vunpack.c.l.b16 %v161
    %v498 = vunpack.c.l.b16 %v162
    %v499 = vunpack.c.l.b16 %v163
    %v500 = vunpack.c.l.b16 %v164
    %v501 = vunpack.c.l.b16 %v165
    %v502 = vunpack.c.l.b16 %v166
    %v503 = vunpack.c.l.b16 %v167
    %v504 = vunpack.c.l.b16 %v168
    %v505 = vunpack.c.l.b16 %v169
    %v506 = vunpack.c.l.b16 %v170
    %v507 = vunpack.c.l.b16 %v171
    %v508 = vunpack.c.l.b16 %v172
    %v509 = vunpack.c.l.b16 %v173
    %v510 = vunpack.c.l.b16 %v174
    %v511 = vunpack.c.l.b16 %v175
    %v512 = vunpack.c.l.b16 %v176
    %v513 = vunpack.c.l.b16 %v177
    %v514 = vunpack.c.l.b16 %v178
    %v515 = vunpack.c.l.b16 %v179
    %v516 = vunpack.c.l.b16 %v180
    %v517 = vunpack.c.l.b16 %v181
    %v518 = vunpack.c.l.b16 %v182
    %v519 = vunpack.c.l.b16 %v183
    %v520 = vunpack.c.l.b16 %v184
    %v521 = vpack.c.b16 %v394, %v393
    %v522 = vpack.c.b16 %v396, %v395
    %v523 = vpack.c.b16 %v398, %v397
    %v524 = vpack.c.b16 %v400, %v399
    %v525 = vpack.c.b16 %v402, %v401
    %v526 = vpack.c.b16 %v404, %v403
    %v527 = vpack.c.b16 %v406, %v405
    %v528 = vpack.c.b16 %v408, %v407
    %v529 = vpack.c.b16 %v410, %v409
    %v530 = vpack.c.b16 %v412, %v411
    %v531 = vpack.c.b16 %v414, %v413
    %v532 = vpack.c.b16 %v416, %v415
    %v533 = vpack.c.b16 %v418, %v417
    %v534 = vpack.c.b16 %v420, %v419
    %v535 = vpack.c.b16 %v422, %v421
    %v536 = vpack.c.b16 %v424, %v423
    %v537 = vpack.c.b16 %v426, %v425
    %v538 = vpack.c.b16 %v428, %v427
    %v539 = vpack.c.b16 %v430, %v429
    %v540 = vpack.c.b16 %v432, %v431
    %v541 = vpack.c.b16 %v434, %v433
    %v542 = vpack.c.b16 %v436, %v435
    %v543 = vpack.c.b16 %v438, %v437
    %v544 = vpack.c.b16 %v440, %v439
    %v545 = vpack.c.b16 %v442, %v441
    %v546 = vpack.c.b16 %v444, %v443
    %v547 = vpack.c.b16 %v446, %v445
    %v548 = vpack.c.b16 %v448, %v447
    %v549 = vpack.c.b16 %v450, %v449
    %v550 = vpack.c.b16 %v452, %v451
    %v551 = vpack.c.b16 %v454, %v453
    %v552 = vpack.c.b16 %v456, %v455
    %v553 = vpack.c.b16 %v458, %v457
    %v554 = vpack.c.b16 %v460, %v459
    %v555 = vpack.c.b16 %v462, %v461
    %v556 = vpack.c.b16 %v464, %v463
    %v557 = vpack.c.b16 %v466, %v465
    %v558 = vpack.c.b16 %v468, %v467
    %v559 = vpack.c.b16 %v470, %v469
    %v560 = vpack.c.b16 %v472, %v471
    %v561 = vpack.c.b16 %v474, %v473
    %v562 = vpack.c.b16 %v476, %v475
    %v563 = vpack.c.b16 %v478, %v477
    %v564 = vpack.c.b16 %v480, %v479
    %v565 = vpack.c.b16 %v482, %v481
    %v566 = vpack.c.b16 %v484, %v483
    %v567 = vpack.c.b16 %v486, %v485
    %v568 = vpack.c.b16 %v488, %v487
    %v569 = vpack.c.b16 %v490, %v489
    %v570 = vpack.c.b16 %v492, %v491
    %v571 = vpack.c.b16 %v494, %v493
    %v572 = vpack.c.b16 %v496, %v495
    %v573 = vpack.c.b16 %v498, %v497
    %v574 = vpack.c.b16 %v500, %v499
    %v575 = vpack.c.b16 %v502, %v501
    %v576 = vpack.c.b16 %v504, %v503
    %v577 = vpack.c.b16 %v506, %v505
    %v578 = vpack.c.b16 %v508, %v507
    %v579 = vpack.c.b16 %v510, %v509
    %v580 = vpack.c.b16 %v512, %v511
    %v581 = vpack.c.b16 %v514, %v513
    %v582 = vpack.c.b16 %v516, %v515
    %v583 = vpack.c.b16 %v518, %v517
    %v584 = vpack.c.b16 %v520, %v519
    %649 = vmatprep.subr.bf16.mxu0 0
    %650 = vmatpush1.bf16.msra.mxu0 %v521
    %651 = vmatprep.subr.bf16.mxu0 0
    %652 = vmatpush1.bf16.msra.mxu0 %v522
    %653 = vmatprep.subr.bf16.mxu0 0
    %654 = vmatpush1.bf16.msra.mxu0 %v523
    %655 = vmatprep.subr.bf16.mxu0 0
    %656 = vmatpush1.bf16.msra.mxu0 %v524
    %657 = vmatprep.subr.bf16.mxu0 0
    %658 = vmatpush1.bf16.msra.mxu0 %v525
    %659 = vmatprep.subr.bf16.mxu0 0
    %660 = vmatpush1.bf16.msra.mxu0 %v526
    %661 = vmatprep.subr.bf16.mxu0 0
    %662 = vmatpush1.bf16.msra.mxu0 %v527
    %663 = vmatprep.subr.bf16.mxu0 0
    %664 = vmatpush1.bf16.msra.mxu0 %v528
    %665 = vmatprep.subr.bf16.mxu0 0
    %666 = vmatpush1.bf16.msra.mxu0 %v529
    %667 = vmatprep.subr.bf16.mxu0 0
    %668 = vmatpush1.bf16.msra.mxu0 %v530
    %669 = vmatprep.subr.bf16.mxu0 0
    %670 = vmatpush1.bf16.msra.mxu0 %v531
    %671 = vmatprep.subr.bf16.mxu0 0
    %672 = vmatpush1.bf16.msra.mxu0 %v532
    %673 = vmatprep.subr.bf16.mxu0 0
    %674 = vmatpush1.bf16.msra.mxu0 %v533
    %675 = vmatprep.subr.bf16.mxu0 0
    %676 = vmatpush1.bf16.msra.mxu0 %v534
    %677 = vmatprep.subr.bf16.mxu0 0
    %678 = vmatpush1.bf16.msra.mxu0 %v535
    %679 = vmatprep.subr.bf16.mxu0 0
    %680 = vmatpush1.bf16.msra.mxu0 %v536
    %681 = vmatprep.mubr.bf16.mxu0 %v234
    %682 = vmatmul.mubr.bf16.gmra.mrb[0].mxu0 %v233
    %v683 = vpop.f32.mrb[0].mxu0
    %v684 = vadd.f32 0.0, %v683
    %v685 = vpop.f32.mrb[0].mxu0
    %v686 = vpop.f32.mrb[0].mxu0
    %v687 = vadd.f32 0.0, %v686
    %v688 = vpop.f32.mrb[0].mxu0
    %689 = vmatprep.mubr.bf16.mxu0 %v242
    %690 = vmatmul.mubr.bf16.gmra.mrb[0].mxu0 %v241
    %v691 = vpop.f32.mrb[0].mxu0
    %v692 = vadd.f32 0.0, %v691
    %v693 = vpop.f32.mrb[0].mxu0
    %v694 = vpop.f32.mrb[0].mxu0
    %v695 = vadd.f32 0.0, %v694
    %v696 = vpop.f32.mrb[0].mxu0
    %697 = vdwg.mxu0
    %698 = vmatprep.subr.bf16.mxu0 0
    %699 = vmatpush1.bf16.msra.mxu0 %v537
    %700 = vmatprep.subr.bf16.mxu0 0
    %701 = vmatpush1.bf16.msra.mxu0 %v538
    %702 = vmatprep.subr.bf16.mxu0 0
    %703 = vmatpush1.bf16.msra.mxu0 %v539
    %704 = vmatprep.subr.bf16.mxu0 0
    %705 = vmatpush1.bf16.msra.mxu0 %v540
    %706 = vmatprep.subr.bf16.mxu0 0
    %707 = vmatpush1.bf16.msra.mxu0 %v541
    %708 = vmatprep.subr.bf16.mxu0 0
    %709 = vmatpush1.bf16.msra.mxu0 %v542
    %710 = vmatprep.subr.bf16.mxu0 0
    %711 = vmatpush1.bf16.msra.mxu0 %v543
    %712 = vmatprep.subr.bf16.mxu0 0
    %713 = vmatpush1.bf16.msra.mxu0 %v544
    %714 = vmatprep.subr.bf16.mxu0 0
    %715 = vmatpush1.bf16.msra.mxu0 %v545
    %716 = vmatprep.subr.bf16.mxu0 0
    %717 = vmatpush1.bf16.msra.mxu0 %v546
    %718 = vmatprep.subr.bf16.mxu0 0
    %719 = vmatpush1.bf16.msra.mxu0 %v547
    %720 = vmatprep.subr.bf16.mxu0 0
    %721 = vmatpush1.bf16.msra.mxu0 %v548
    %722 = vmatprep.subr.bf16.mxu0 0
    %723 = vmatpush1.bf16.msra.mxu0 %v549
    %724 = vmatprep.subr.bf16.mxu0 0
    %725 = vmatpush1.bf16.msra.mxu0 %v550
    %726 = vmatprep.subr.bf16.mxu0 0
    %727 = vmatpush1.bf16.msra.mxu0 %v551
    %728 = vmatprep.subr.bf16.mxu0 0
    %729 = vmatpush1.bf16.msra.mxu0 %v552
    %730 = vmatprep.mubr.bf16.mxu0 %v236
    %731 = vmatmul.mubr.bf16.gmra.mrb[0].mxu0 %v235
    %v732 = vpop.f32.mrb[0].mxu0
    %v733 = vadd.f32 %v684, %v732
    %v734 = vpop.f32.mrb[0].mxu0
    %v735 = vpop.f32.mrb[0].mxu0
    %v736 = vadd.f32 %v687, %v735
    %v737 = vpop.f32.mrb[0].mxu0
    %738 = vmatprep.mubr.bf16.mxu0 %v244
    %739 = vmatmul.mubr.bf16.gmra.mrb[0].mxu0 %v243
    %v740 = vpop.f32.mrb[0].mxu0
    %v741 = vadd.f32 %v692, %v740
    %v742 = vpop.f32.mrb[0].mxu0
    %v743 = vpop.f32.mrb[0].mxu0
    %v744 = vadd.f32 %v695, %v743
    %v745 = vpop.f32.mrb[0].mxu0
    %746 = vdwg.mxu0
    %747 = vmatprep.subr.bf16.mxu0 0
    %748 = vmatpush1.bf16.msra.mxu0 %v553
    %749 = vmatprep.subr.bf16.mxu0 0
    %750 = vmatpush1.bf16.msra.mxu0 %v554
    %751 = vmatprep.subr.bf16.mxu0 0
    %752 = vmatpush1.bf16.msra.mxu0 %v555
    %753 = vmatprep.subr.bf16.mxu0 0
    %754 = vmatpush1.bf16.msra.mxu0 %v556
    %755 = vmatprep.subr.bf16.mxu0 0
    %756 = vmatpush1.bf16.msra.mxu0 %v557
    %757 = vmatprep.subr.bf16.mxu0 0
    %758 = vmatpush1.bf16.msra.mxu0 %v558
    %759 = vmatprep.subr.bf16.mxu0 0
    %760 = vmatpush1.bf16.msra.mxu0 %v559
    %761 = vmatprep.subr.bf16.mxu0 0
    %762 = vmatpush1.bf16.msra.mxu0 %v560
    %763 = vmatprep.subr.bf16.mxu0 0
    %764 = vmatpush1.bf16.msra.mxu0 %v561
    %765 = vmatprep.subr.bf16.mxu0 0
    %766 = vmatpush1.bf16.msra.mxu0 %v562
    %767 = vmatprep.subr.bf16.mxu0 0
    %768 = vmatpush1.bf16.msra.mxu0 %v563
    %769 = vmatprep.subr.bf16.mxu0 0
    %770 = vmatpush1.bf16.msra.mxu0 %v564
    %771 = vmatprep.subr.bf16.mxu0 0
    %772 = vmatpush1.bf16.msra.mxu0 %v565
    %773 = vmatprep.subr.bf16.mxu0 0
    %774 = vmatpush1.bf16.msra.mxu0 %v566
    %775 = vmatprep.subr.bf16.mxu0 0
    %776 = vmatpush1.bf16.msra.mxu0 %v567
    %777 = vmatprep.subr.bf16.mxu0 0
    %778 = vmatpush1.bf16.msra.mxu0 %v568
    %779 = vmatprep.mubr.bf16.mxu0 %v238
    %780 = vmatmul.mubr.bf16.gmra.mrb[0].mxu0 %v237
    %v781 = vpop.f32.mrb[0].mxu0
    %v782 = vadd.f32 %v733, %v781
    %v783 = vpop.f32.mrb[0].mxu0
    %v784 = vpop.f32.mrb[0].mxu0
    %v785 = vadd.f32 %v736, %v784
    %v786 = vpop.f32.mrb[0].mxu0
    %787 = vmatprep.mubr.bf16.mxu0 %v246
    %788 = vmatmul.mubr.bf16.gmra.mrb[0].mxu0 %v245
    %v789 = vpop.f32.mrb[0].mxu0
    %v790 = vadd.f32 %v741, %v789
    %v791 = vpop.f32.mrb[0].mxu0
    %v792 = vpop.f32.mrb[0].mxu0
    %v793 = vadd.f32 %v744, %v792
    %v794 = vpop.f32.mrb[0].mxu0
    %795 = vdwg.mxu0
    %796 = vmatprep.subr.bf16.mxu0 0
    %797 = vmatpush1.bf16.msra.mxu0 %v569
    %798 = vmatprep.subr.bf16.mxu0 0
    %799 = vmatpush1.bf16.msra.mxu0 %v570
    %800 = vmatprep.subr.bf16.mxu0 0
    %801 = vmatpush1.bf16.msra.mxu0 %v571
    %802 = vmatprep.subr.bf16.mxu0 0
    %803 = vmatpush1.bf16.msra.mxu0 %v572
    %804 = vmatprep.subr.bf16.mxu0 0
    %805 = vmatpush1.bf16.msra.mxu0 %v573
    %806 = vmatprep.subr.bf16.mxu0 0
    %807 = vmatpush1.bf16.msra.mxu0 %v574
    %808 = vmatprep.subr.bf16.mxu0 0
    %809 = vmatpush1.bf16.msra.mxu0 %v575
    %810 = vmatprep.subr.bf16.mxu0 0
    %811 = vmatpush1.bf16.msra.mxu0 %v576
    %812 = vmatprep.subr.bf16.mxu0 0
    %813 = vmatpush1.bf16.msra.mxu0 %v577
    %814 = vmatprep.subr.bf16.mxu0 0
    %815 = vmatpush1.bf16.msra.mxu0 %v578
    %816 = vmatprep.subr.bf16.mxu0 0
    %817 = vmatpush1.bf16.msra.mxu0 %v579
    %818 = vmatprep.subr.bf16.mxu0 0
    %819 = vmatpush1.bf16.msra.mxu0 %v580
    %820 = vmatprep.subr.bf16.mxu0 0
    %821 = vmatpush1.bf16.msra.mxu0 %v581
    %822 = vmatprep.subr.bf16.mxu0 0
    %823 = vmatpush1.bf16.msra.mxu0 %v582
    %824 = vmatprep.subr.bf16.mxu0 0
    %825 = vmatpush1.bf16.msra.mxu0 %v583
    %826 = vmatprep.subr.bf16.mxu0 0
    %827 = vmatpush1.bf16.msra.mxu0 %v584
    %828 = vmatprep.mubr.bf16.mxu0 %v240
    %829 = vmatmul.mubr.bf16.gmra.mrb[0].mxu0 %v239
    %v830 = vpop.f32.mrb[0].mxu0
    %v831 = vadd.f32 %v782, %v830
    %v832 = vpop.f32.mrb[0].mxu0
    %v833 = vpop.f32.mrb[0].mxu0
    %v834 = vadd.f32 %v785, %v833
    %v835 = vpop.f32.mrb[0].mxu0
    %836 = vmatprep.mubr.bf16.mxu0 %v248
    %837 = vmatmul.mubr.bf16.gmra.mrb[0].mxu0 %v247
    %v838 = vpop.f32.mrb[0].mxu0
    %v839 = vadd.f32 %v790, %v838
    %v840 = vpop.f32.mrb[0].mxu0
    %v841 = vpop.f32.mrb[0].mxu0
    %v842 = vadd.f32 %v793, %v841
    %v843 = vpop.f32.mrb[0].mxu0
    %844 = vdwg.mxu0
    %845 = vst [vmem:[#allocation7] sm:$0xff] %v831
    %846 = vst [vmem:[#allocation7 + $0x8] sm:$0xff] %v834
    %847 = vst [vmem:[#allocation7 + $0x10] sm:$0xff] %v839
    %848 = vst [vmem:[#allocation7 + $0x18] sm:$0xff] %v842
    // Predicated region
    $region18: #{tpu_custom_call.1} parent=1 // pred_check
      _
    $region19: #{tpu_custom_call.1} parent=1 // pred_check_branch
      %850 = sbr.rel (0) target = $region21
    $region20: #{tpu_custom_call.1} parent=1 // pred_region
      %s852 = ssub.s32 512, 512
      %853 = vsyncadd [#allocation4], %s852
      %s854 = sshll.u32 [#allocation7], 4
      %s855 = int_to_ptr.vmem [resolvable:$true] %s854
      %860 = dma.vmem_to_hbm [thread:$0]  %s855, 512, %s2, [#allocation4], 128, 128, 8
    $region21: #{tpu_custom_call.1} parent=1 // pred_fallthru
      _
    // Predicated region
    $region22: #{tpu_custom_call.1} parent=1 // pred_check
      _
    $region23: #{tpu_custom_call.1} parent=1 // pred_check_branch
      %862 = sbr.rel (0) target = $region25
    $region24: #{tpu_custom_call.1} parent=1 // pred_region
      %863 = dma.done [#allocation4], 512
    $region25: #{tpu_custom_call.1} parent=1 // pred_fallthru
      _
    %864 = vsyncpa [#allocation3], 1
    %865 = vsyncpa [#allocation6], 1
    %866 = vsyncpa [#allocation4], 1

</llo_original>
